<compile_context>
chip_gen: v7x
topology: tpu7x:2x2x1
jax: 0.10.0
libtpu: 0.0.40
codegen_flags: <defaults>
</compile_context>

<pallas_src>
import functools

import jax
import jax.numpy as jnp
from jax import lax
from jax.experimental import pallas as pl
from jax.experimental.pallas import tpu as pltpu

EPS = 1e-5
_VMEM_LIMIT = 48 * 1024 * 1024      # scoped VMEM limit (<= v7x physical 64 MiB)
_X_BLOCK_BYTES = 6 * 1024 * 1024    # target bytes per (n_tile, C, m_tile) block


def _pick_tiles(N, C, M_pad, itemsize, max_bytes=_X_BLOCK_BYTES, m_cap=None):
    """Pick (n_tile, m_tile): n_tile divides N, m_tile is a multiple of 128
    dividing M_pad, and one (n_tile, C, m_tile) block stays under max_bytes."""
    # Largest divisor of N for which even a minimal (n_tile, C, 128) block fits.
    n_tile = 1
    for d in range(N, 0, -1):
        if N % d == 0 and d * C * 128 * itemsize <= max_bytes:
            n_tile = d
            break
    budget_m = max(128, max_bytes // (n_tile * C * itemsize))
    m_tile = min(M_pad, (budget_m // 128) * 128)
    if m_cap is not None:
        m_tile = min(m_tile, max(128, (m_cap // 128) * 128))
    m_tile = max(m_tile, 128)
    while M_pad % m_tile != 0:   # terminates: 128 always divides M_pad
        m_tile -= 128
    return n_tile, m_tile


def _bn_fused_kernel(x_ref, gamma_ref, beta_ref, o_ref,
                     sum_ref, sumsq_ref, scale_ref, shift_ref, *, inv_count):
    """Fused 2-phase BN: phase 0 accumulates stats + finalizes scale/shift in
    VMEM scratch; phase 1 applies out = x * scale + shift."""
    phase = pl.program_id(0)
    ni = pl.program_id(1)
    mi = pl.program_id(2)
    n_n = pl.num_programs(1)
    n_m = pl.num_programs(2)

    is_stats = phase == 0
    is_first = jnp.logical_and(is_stats, jnp.logical_and(ni == 0, mi == 0))
    is_last_stats = jnp.logical_and(
        is_stats, jnp.logical_and(ni == n_n - 1, mi == n_m - 1))

    @pl.when(is_first)
    def _init():
        sum_ref[...] = jnp.zeros_like(sum_ref)
        sumsq_ref[...] = jnp.zeros_like(sumsq_ref)

    @pl.when(is_stats)
    def _stats():
        x = x_ref[...].astype(jnp.float32)               # (n_tile, C, m_tile)
        # Reduce the small leading batch axis first (pure VALU vreg adds),
        # then a single cross-lane reduce per channel (XLU).
        xs = jnp.sum(x, axis=0)                          # (C, m_tile)
        xs2 = jnp.sum(x * x, axis=0)                     # (C, m_tile)
        sum_ref[...] += jnp.sum(xs, axis=1, keepdims=True)     # (C, 1)
        sumsq_ref[...] += jnp.sum(xs2, axis=1, keepdims=True)  # (C, 1)

    @pl.when(is_last_stats)
    def _finalize():
        mean = sum_ref[...] * inv_count
        var = sumsq_ref[...] * inv_count - mean * mean   # biased (training) var
        inv_std = lax.rsqrt(var + EPS)
        scale = gamma_ref[...] * inv_std
        scale_ref[...] = scale
        shift_ref[...] = beta_ref[...] - mean * scale

    @pl.when(phase == 1)
    def _apply():
        x = x_ref[...].astype(jnp.float32)
        o_ref[...] = (x * scale_ref[...] + shift_ref[...]).astype(o_ref.dtype)


def batchnorm_pallas(x_nchw, gamma, beta, *, max_m_tile=None):
    """Training-mode batch norm over the channel dim of an NCHW tensor."""
    N, C, H, W = x_nchw.shape
    M = H * W
    M_pad = ((M + 127) // 128) * 128
    x3 = x_nchw.reshape(N, C, M)                 # free trailing-dim merge
    if M_pad != M:
        # Zero padding contributes 0 to sum/sumsq, so stats stay exact with
        # the true element count below.
        x3 = jnp.pad(x3, ((0, 0), (0, 0), (0, M_pad - M)))
    g2 = gamma.reshape(C, 1).astype(jnp.float32)
    b2 = beta.reshape(C, 1).astype(jnp.float32)

    itemsize = jnp.dtype(x_nchw.dtype).itemsize
    n_tile, m_tile = _pick_tiles(N, C, M_pad, itemsize, m_cap=max_m_tile)
    n_n = N // n_tile
    n_m = M_pad // m_tile
    inv_count = 1.0 / float(N * M)               # true count (excludes padding)

    x_bytes = N * C * M_pad * itemsize
    resident = (n_n == 1 and n_m == 1)           # x fetched once in that case
    cost = pl.CostEstimate(
        flops=5 * N * C * M_pad,
        transcendentals=C,
        bytes_accessed=(2 if resident else 3) * x_bytes)

    out3 = pl.pallas_call(
        functools.partial(_bn_fused_kernel, inv_count=inv_count),
        out_shape=jax.ShapeDtypeStruct((N, C, M_pad), x_nchw.dtype),
        grid_spec=pltpu.PrefetchScalarGridSpec(
            num_scalar_prefetch=0,
            grid=(2, n_n, n_m),                  # (phase, N-chunks, M-tiles)
            in_specs=[
                pl.BlockSpec((n_tile, C, m_tile),
                             lambda p, ni, mi: (ni, 0, mi)),
                pl.BlockSpec((C, 1), lambda p, ni, mi: (0, 0)),
                pl.BlockSpec((C, 1), lambda p, ni, mi: (0, 0)),
            ],
            # Phase 0 parks the output on block (0,0,0) (never written, never
            # flushed); phase 1 streams the real blocks.
            out_specs=pl.BlockSpec((n_tile, C, m_tile),
                                   lambda p, ni, mi: (ni * p, 0, mi * p)),
            scratch_shapes=[pltpu.VMEM((C, 1), jnp.float32),   # sum
                            pltpu.VMEM((C, 1), jnp.float32),   # sumsq
                            pltpu.VMEM((C, 1), jnp.float32),   # scale
                            pltpu.VMEM((C, 1), jnp.float32)]), # shift
        compiler_params=pltpu.CompilerParams(
            dimension_semantics=("arbitrary", "arbitrary", "arbitrary"),
            vmem_limit_bytes=_VMEM_LIMIT),
        cost_estimate=cost,
    )(x3, g2, b2)

    if M_pad != M:
        out3 = out3[:, :, :M]
    return out3.reshape(N, C, H, W)


def _ref_bn(x, gamma, beta):
    C = x.shape[1]
    mean = jnp.mean(x, axis=(0, 2, 3), keepdims=True)
    var = jnp.mean((x - mean) ** 2, axis=(0, 2, 3), keepdims=True)
    return (x - mean) * lax.rsqrt(var + EPS) * gamma.reshape(1, C, 1, 1) \
        + beta.reshape(1, C, 1, 1)


if __name__ == "__main__":
    key = jax.random.PRNGKey(0)
    kx, kg, kb, kx2 = jax.random.split(key, 4)
    N, C, H, W = 2, 100, 16, 16          # channels fixed at 100 by BatchNormInt(100)
    x = jax.random.normal(kx, (N, C, H, W), dtype=jnp.float32)
    gamma = 1.0 + 0.1 * jax.random.normal(kg, (C,), dtype=jnp.float32)
    beta = 0.1 * jax.random.normal(kb, (C,), dtype=jnp.float32)
    ref = _ref_bn(x, gamma, beta)

    # Resident single-block path (whole tensor fits one block -> x read once).
    out = jax.block_until_ready(batchnorm_pallas(x, gamma, beta))
    assert out.shape == x.shape and out.dtype == x.dtype
    assert jnp.allclose(out, ref, atol=1e-4, rtol=1e-4), "mismatch (resident path)"

    # Force multiple M tiles to exercise the streaming 2-phase path.
    out_tiled = jax.block_until_ready(batchnorm_pallas(x, gamma, beta, max_m_tile=128))
    assert jnp.allclose(out_tiled, ref, atol=1e-4, rtol=1e-4), "mismatch (tiled path)"

    # Non-multiple-of-128 spatial size exercises the zero-padded M path.
    x2 = jax.random.normal(kx2, (2, C, 10, 10), dtype=jnp.float32)
    ref2 = _ref_bn(x2, gamma, beta)
    out2 = jax.block_until_ready(batchnorm_pallas(x2, gamma, beta))
    assert jnp.allclose(out2, ref2, atol=1e-4, rtol=1e-4), "mismatch (padded-M path)"

    print("KERNEL_OK")
</pallas_src>

<mosaic_0001>
module attributes {stable_mosaic.version = 11 : i64} {
  func.func @_bn_fused_kernel(%arg0: i32, %arg1: i32, %arg2: i32, %arg3: memref<2x100x256xf32, #tpu.memory_space<vmem>>, %arg4: memref<100x1xf32, #tpu.memory_space<vmem>>, %arg5: memref<100x1xf32, #tpu.memory_space<vmem>>, %arg6: memref<2x100x256xf32, #tpu.memory_space<vmem>>, %arg7: memref<100x1xf32, #tpu.memory_space<vmem>>, %arg8: memref<100x1xf32, #tpu.memory_space<vmem>>, %arg9: memref<100x1xf32, #tpu.memory_space<vmem>>, %arg10: memref<100x1xf32, #tpu.memory_space<vmem>>) attributes {dimension_semantics = [#tpu.dimension_semantics<arbitrary>, #tpu.dimension_semantics<arbitrary>, #tpu.dimension_semantics<arbitrary>], iteration_bounds = array<i64: 2, 1, 1>, scalar_prefetch = 0 : i64, scratch_operands = 4 : i64, tpu.core_type = #tpu.core_type<tc>, window_params = [{transform_indices = @transform_0, window_bounds = array<i64: 2, 100, 256>}, {pipeline_mode = #tpu.pipeline_mode<synchronous>, transform_indices = @transform_1, window_bounds = array<i64: 100, 1>}, {pipeline_mode = #tpu.pipeline_mode<synchronous>, transform_indices = @transform_2, window_bounds = array<i64: 100, 1>}, {transform_indices = @transform_3, window_bounds = array<i64: 2, 100, 256>}]} {
    %c0_i32 = arith.constant 0 : i32
    %0 = arith.cmpi eq, %arg0, %c0_i32 : i32
    %c0_i32_0 = arith.constant 0 : i32
    %1 = arith.cmpi eq, %arg1, %c0_i32_0 : i32
    %c0_i32_1 = arith.constant 0 : i32
    %2 = arith.cmpi eq, %arg2, %c0_i32_1 : i32
    %3 = arith.andi %1, %2 : i1
    %4 = arith.andi %0, %3 : i1
    %c0_i32_2 = arith.constant 0 : i32
    %5 = arith.cmpi eq, %arg1, %c0_i32_2 : i32
    %c0_i32_3 = arith.constant 0 : i32
    %6 = arith.cmpi eq, %arg2, %c0_i32_3 : i32
    %7 = arith.andi %5, %6 : i1
    %8 = arith.andi %0, %7 : i1
    %9 = arith.extui %4 : i1 to i32
    %c0_i32_4 = arith.constant 0 : i32
    %10 = arith.cmpi ne, %9, %c0_i32_4 : i32
    scf.if %10 {
      %cst = arith.constant 0.000000e+00 : f32
      %18 = vector.broadcast %cst : f32 to vector<100x1xf32>
      %c0 = arith.constant 0 : index
      %c0_8 = arith.constant 0 : index
      %19 = vector.load %arg7[%c0, %c0_8] : memref<100x1xf32, #tpu.memory_space<vmem>>, vector<100x1xf32>
      tpu.vector_store %arg7[%c0, %c0_8], %18 {strides = array<i32>} : memref<100x1xf32, #tpu.memory_space<vmem>>, vector<100x1xf32>,
      %cst_9 = arith.constant 0.000000e+00 : f32
      %20 = vector.broadcast %cst_9 : f32 to vector<100x1xf32>
      %c0_10 = arith.constant 0 : index
      %c0_11 = arith.constant 0 : index
      %21 = vector.load %arg8[%c0_10, %c0_11] : memref<100x1xf32, #tpu.memory_space<vmem>>, vector<100x1xf32>
      tpu.vector_store %arg8[%c0_10, %c0_11], %20 {strides = array<i32>} : memref<100x1xf32, #tpu.memory_space<vmem>>, vector<100x1xf32>,
    } else {
    }
    %11 = arith.extui %0 : i1 to i32
    %c0_i32_5 = arith.constant 0 : i32
    %12 = arith.cmpi ne, %11, %c0_i32_5 : i32
    scf.if %12 {
      %c0 = arith.constant 0 : index
      %c0_8 = arith.constant 0 : index
      %c0_9 = arith.constant 0 : index
      %18 = vector.load %arg3[%c0, %c0_8, %c0_9] : memref<2x100x256xf32, #tpu.memory_space<vmem>>, vector<2x100x256xf32>
      %cst = arith.constant dense<0.000000e+00> : vector<100x256xf32>
      %19 = vector.multi_reduction <add>, %18, %cst [0] : vector<2x100x256xf32> to vector<100x256xf32>
      %20 = arith.mulf %18, %18 : vector<2x100x256xf32>
      %cst_10 = arith.constant dense<0.000000e+00> : vector<100x256xf32>
      %21 = vector.multi_reduction <add>, %20, %cst_10 [0] : vector<2x100x256xf32> to vector<100x256xf32>
      %c0_11 = arith.constant 0 : index
      %c0_12 = arith.constant 0 : index
      %22 = vector.load %arg7[%c0_11, %c0_12] : memref<100x1xf32, #tpu.memory_space<vmem>>, vector<100x1xf32>
      %cst_13 = arith.constant dense<0.000000e+00> : vector<100xf32>
      %23 = vector.multi_reduction <add>, %19, %cst_13 [1] : vector<100x256xf32> to vector<100xf32>
      %24 = vector.shape_cast %23 : vector<100xf32> to vector<100x1xf32>
      %25 = arith.addf %22, %24 : vector<100x1xf32>
      %c0_14 = arith.constant 0 : index
      %c0_15 = arith.constant 0 : index
      %26 = vector.load %arg7[%c0_14, %c0_15] : memref<100x1xf32, #tpu.memory_space<vmem>>, vector<100x1xf32>
      tpu.vector_store %arg7[%c0_14, %c0_15], %25 {strides = array<i32>} : memref<100x1xf32, #tpu.memory_space<vmem>>, vector<100x1xf32>,
      %c0_16 = arith.constant 0 : index
      %c0_17 = arith.constant 0 : index
      %27 = vector.load %arg8[%c0_16, %c0_17] : memref<100x1xf32, #tpu.memory_space<vmem>>, vector<100x1xf32>
      %cst_18 = arith.constant dense<0.000000e+00> : vector<100xf32>
      %28 = vector.multi_reduction <add>, %21, %cst_18 [1] : vector<100x256xf32> to vector<100xf32>
      %29 = vector.shape_cast %28 : vector<100xf32> to vector<100x1xf32>
      %30 = arith.addf %27, %29 : vector<100x1xf32>
      %c0_19 = arith.constant 0 : index
      %c0_20 = arith.constant 0 : index
      %31 = vector.load %arg8[%c0_19, %c0_20] : memref<100x1xf32, #tpu.memory_space<vmem>>, vector<100x1xf32>
      tpu.vector_store %arg8[%c0_19, %c0_20], %30 {strides = array<i32>} : memref<100x1xf32, #tpu.memory_space<vmem>>, vector<100x1xf32>,
    } else {
    }
    %13 = arith.extui %8 : i1 to i32
    %c0_i32_6 = arith.constant 0 : i32
    %14 = arith.cmpi ne, %13, %c0_i32_6 : i32
    scf.if %14 {
      %c0 = arith.constant 0 : index
      %c0_8 = arith.constant 0 : index
      %18 = vector.load %arg7[%c0, %c0_8] : memref<100x1xf32, #tpu.memory_space<vmem>>, vector<100x1xf32>
      %cst = arith.constant 0.001953125 : f32
      %19 = vector.broadcast %cst : f32 to vector<100x1xf32>
      %20 = arith.mulf %18, %19 : vector<100x1xf32>
      %c0_9 = arith.constant 0 : index
      %c0_10 = arith.constant 0 : index
      %21 = vector.load %arg8[%c0_9, %c0_10] : memref<100x1xf32, #tpu.memory_space<vmem>>, vector<100x1xf32>
      %cst_11 = arith.constant 0.001953125 : f32
      %22 = vector.broadcast %cst_11 : f32 to vector<100x1xf32>
      %23 = arith.mulf %21, %22 : vector<100x1xf32>
      %24 = arith.mulf %20, %20 : vector<100x1xf32>
      %25 = arith.subf %23, %24 : vector<100x1xf32>
      %cst_12 = arith.constant 9.99999974E-6 : f32
      %26 = vector.broadcast %cst_12 : f32 to vector<100x1xf32>
      %27 = arith.addf %25, %26 : vector<100x1xf32>
      %28 = math.rsqrt %27 : vector<100x1xf32>
      %c0_13 = arith.constant 0 : index
      %c0_14 = arith.constant 0 : index
      %29 = vector.load %arg4[%c0_13, %c0_14] : memref<100x1xf32, #tpu.memory_space<vmem>>, vector<100x1xf32>
      %30 = arith.mulf %29, %28 : vector<100x1xf32>
      %c0_15 = arith.constant 0 : index
      %c0_16 = arith.constant 0 : index
      %31 = vector.load %arg9[%c0_15, %c0_16] : memref<100x1xf32, #tpu.memory_space<vmem>>, vector<100x1xf32>
      tpu.vector_store %arg9[%c0_15, %c0_16], %30 {strides = array<i32>} : memref<100x1xf32, #tpu.memory_space<vmem>>, vector<100x1xf32>,
      %c0_17 = arith.constant 0 : index
      %c0_18 = arith.constant 0 : index
      %32 = vector.load %arg5[%c0_17, %c0_18] : memref<100x1xf32, #tpu.memory_space<vmem>>, vector<100x1xf32>
      %33 = arith.mulf %20, %30 : vector<100x1xf32>
      %34 = arith.subf %32, %33 : vector<100x1xf32>
      %c0_19 = arith.constant 0 : index
      %c0_20 = arith.constant 0 : index
      %35 = vector.load %arg10[%c0_19, %c0_20] : memref<100x1xf32, #tpu.memory_space<vmem>>, vector<100x1xf32>
      tpu.vector_store %arg10[%c0_19, %c0_20], %34 {strides = array<i32>} : memref<100x1xf32, #tpu.memory_space<vmem>>, vector<100x1xf32>,
    } else {
    }
    %c1_i32 = arith.constant 1 : i32
    %15 = arith.cmpi eq, %arg0, %c1_i32 : i32
    %16 = arith.extui %15 : i1 to i32
    %c0_i32_7 = arith.constant 0 : i32
    %17 = arith.cmpi ne, %16, %c0_i32_7 : i32
    scf.if %17 {
      %c0 = arith.constant 0 : index
      %c0_8 = arith.constant 0 : index
      %c0_9 = arith.constant 0 : index
      %18 = vector.load %arg3[%c0, %c0_8, %c0_9] : memref<2x100x256xf32, #tpu.memory_space<vmem>>, vector<2x100x256xf32>
      %c0_10 = arith.constant 0 : index
      %c0_11 = arith.constant 0 : index
      %19 = vector.load %arg9[%c0_10, %c0_11] : memref<100x1xf32, #tpu.memory_space<vmem>>, vector<100x1xf32>
      %20 = vector.shape_cast %19 : vector<100x1xf32> to vector<1x100x1xf32>
      %21 = vector.broadcast %20 : vector<1x100x1xf32> to vector<2x100x256xf32>
      %22 = arith.mulf %18, %21 : vector<2x100x256xf32>
      %c0_12 = arith.constant 0 : index
      %c0_13 = arith.constant 0 : index
      %23 = vector.load %arg10[%c0_12, %c0_13] : memref<100x1xf32, #tpu.memory_space<vmem>>, vector<100x1xf32>
      %24 = vector.shape_cast %23 : vector<100x1xf32> to vector<1x100x1xf32>
      %25 = vector.broadcast %24 : vector<1x100x1xf32> to vector<2x100x256xf32>
      %26 = arith.addf %22, %25 : vector<2x100x256xf32>
      %c0_14 = arith.constant 0 : index
      %c0_15 = arith.constant 0 : index
      %c0_16 = arith.constant 0 : index
      %27 = vector.load %arg6[%c0_14, %c0_15, %c0_16] : memref<2x100x256xf32, #tpu.memory_space<vmem>>, vector<2x100x256xf32>
      tpu.vector_store %arg6[%c0_14, %c0_15, %c0_16], %26 {strides = array<i32>} : memref<2x100x256xf32, #tpu.memory_space<vmem>>, vector<2x100x256xf32>,
    } else {
    }
    return
  }
  func.func @transform_0(%arg0: i32, %arg1: i32, %arg2: i32) -> (i32, i32, i32) {
    %c0_i32 = arith.constant 0 : i32
    %c0_i32_0 = arith.constant 0 : i32
    return %arg1, %c0_i32, %arg2 : i32, i32, i32
  }
  func.func @transform_1(%arg0: i32, %arg1: i32, %arg2: i32) -> (i32, i32) {
    %c0_i32 = arith.constant 0 : i32
    %c0_i32_0 = arith.constant 0 : i32
    %c0_i32_1 = arith.constant 0 : i32
    return %c0_i32, %c0_i32_0 : i32, i32
  }
  func.func @transform_2(%arg0: i32, %arg1: i32, %arg2: i32) -> (i32, i32) {
    %c0_i32 = arith.constant 0 : i32
    %c0_i32_0 = arith.constant 0 : i32
    %c0_i32_1 = arith.constant 0 : i32
    return %c0_i32, %c0_i32_0 : i32, i32
  }
  func.func @transform_3(%arg0: i32, %arg1: i32, %arg2: i32) -> (i32, i32, i32) {
    %0 = arith.muli %arg1, %arg0 : i32
    %1 = arith.muli %arg2, %arg0 : i32
    %c0_i32 = arith.constant 0 : i32
    %c0_i32_0 = arith.constant 0 : i32
    return %0, %c0_i32, %1 : i32, i32, i32
  }
}

</mosaic_0001>

<llo_original>
// kernel: tpu_custom_call.1
$region0: #{tpu_custom_call.1}
  #allocation0 [shape = 'u32[]', space=smem, size = 0x4, offset = 0x4, fixed_abs, tag = 'smem constant byte address 0x4 - core index']
  #allocation1 [shape = 'u32[144,128]{1,0:T(1,128)}', space=vmem, size = 0x12000, scoped, tag = 'internal scratch']
  #allocation2 [shape = 'f32[100,1]{1,0:T(8,128)}', space=vmem, size = 0xd000, scoped, tag = 'scratch operand']
  #allocation3 [shape = 'f32[100,1]{1,0:T(8,128)}', space=vmem, size = 0xd000, scoped, tag = 'scratch operand']
  #allocation4 [shape = 'f32[100,1]{1,0:T(8,128)}', space=vmem, size = 0xd000, scoped, tag = 'scratch operand']
  #allocation5 [shape = 'f32[100,1]{1,0:T(8,128)}', space=vmem, size = 0xd000, scoped, tag = 'scratch operand']
  %s0 = inlined_call_operand.vmem [shape: f32[2,100,256], index: 0, kind: input, shape index: {}]
  %s1 = inlined_call_operand.vmem [shape: f32[100,1], index: 1, kind: input, shape index: {}]
  %s2 = inlined_call_operand.vmem [shape: f32[100,1], index: 2, kind: input, shape index: {}]
  %s3 = inlined_call_operand.vmem [shape: f32[2,100,256], index: 3, kind: output, shape index: {}]
  %s4 = sld [smem:[#allocation0]]
  $region61: #{tpu_custom_call.1} parent=0
    _
  %s6 = ssub.s32 1, %s4
  %s7 = scalar_select 0, %s6, %s4
  loop: start=0, step=1, limit=4
  $region2: #{tpu_custom_call.1} parent=0 // loop_pre_header
    _
  $region3: #{tpu_custom_call.1} parent=0 // loop_header
    %s9 = sphi 0, %s13
    %p10 = scmp.ge.s32.totalorder %s9, 4
    %s16 = sphi 0, %s35
    %s17 = sphi 0, %s31
    %s18 = sphi 0, %s27
    %s19 = sphi 0, %s16
    %s20 = sphi 0, %s17
    %s21 = sphi 0, %s18
    %s22 = sphi 0, %s19
    %s23 = sphi 0, %s20
    %s24 = sphi 0, %s21
    %s40 = sphi 0, %s42
    %s43 = sphi 0, %s40
    %s44 = sphi 0, %s43
    %s60 = sphi 0, %s44
    %s64 = sphi 0, %s64
    %s66 = sphi 0, %s64
    %s67 = sphi 0, %s66
    %s81 = sphi 0, %s67
    %s85 = sphi 0, %s85
    %s87 = sphi 0, %s85
    %s88 = sphi 0, %s87
    %s102 = sphi 0, %s88
    %s114 = sphi 0, %s116
    %s117 = sphi 0, %s114
    %s118 = sphi 0, %s117
    %s134 = sphi 0, %s118
  $region4: #{tpu_custom_call.1} parent=0 // loop_header_branch
    %12 = sbr.rel (%p10) target = $region8
  $region5: #{tpu_custom_call.1} parent=0 // loop_body
    %s14 = ssub.s32 %s9, 1
    %s15 = ssub.s32 %s9, 2
    %s25 = sadd.s32 1, %s18
    %p26 = scmp.ge.s32.totalorder %s25, 1
    %s27 = scalar_select %p26, 0, %s25
    %s28 = sadd.s32 1, %s17
    %s29 = scalar_select %p26, %s28, %s17
    %p30 = scmp.ge.s32.totalorder %s29, 1
    %s31 = scalar_select %p30, 0, %s29
    %s32 = sadd.s32 1, %s16
    %s33 = scalar_select %p30, %s32, %s16
    %p34 = scmp.ge.s32.totalorder %s33, 2
    %s35 = scalar_select %p34, 0, %s33
    %s36 = ssub.s32 %s17, %s31
    %s37 = ssub.s32 %s18, %s27
    %s38 = sor.u32 %s36, %s37
    %p39 = scmp.eq.s32.totalorder %s38, 0
    %s41 = sadd.s32 %s40, 1
    %s42 = scalar_select %p39, %s40, %s41
    %p45 = pneg %p39
    %p46 = scmp.eq.s32.totalorder %s9, 1
    %p47 = por %p45, %p46
    %p48 = scmp.ne.s32.totalorder %s40, %s43
    %p49 = scmp.eq.s32.totalorder %s9, 0
    %p50 = por %p48, %p49
    %p51 = scmp.ne.s32.totalorder %s40, %s43
    %p52 = scmp.eq.s32.totalorder %s14, 1
    %p53 = por %p51, %p52
    %p54 = scmp.ne.s32.totalorder %s43, %s44
    %p55 = scmp.eq.s32.totalorder %s14, 0
    %p56 = por %p54, %p55
    %p57 = scmp.ne.s32.totalorder %s43, %s44
    %p58 = scmp.eq.s32.totalorder %s15, 1
    %p59 = por %p57, %p58
    %p61 = scmp.ne.s32.totalorder %s44, %s60
    %p62 = scmp.eq.s32.totalorder %s15, 0
    %p63 = por %p61, %p62
    %s65 = sadd.s32 %s64, 1
    %p68 = scmp.eq.s32.totalorder %s9, 1
    %p69 = scmp.ne.s32.totalorder %s64, %s66
    %p70 = scmp.eq.s32.totalorder %s9, 0
    %p71 = por %p69, %p70
    %p72 = scmp.ne.s32.totalorder %s64, %s66
    %p73 = scmp.eq.s32.totalorder %s14, 1
    %p74 = por %p72, %p73
    %p75 = scmp.ne.s32.totalorder %s66, %s67
    %p76 = scmp.eq.s32.totalorder %s14, 0
    %p77 = por %p75, %p76
    %p78 = scmp.ne.s32.totalorder %s66, %s67
    %p79 = scmp.eq.s32.totalorder %s15, 1
    %p80 = por %p78, %p79
    %p82 = scmp.ne.s32.totalorder %s67, %s81
    %p83 = scmp.eq.s32.totalorder %s15, 0
    %p84 = por %p82, %p83
    %s86 = sadd.s32 %s85, 1
    %p89 = scmp.eq.s32.totalorder %s9, 1
    %p90 = scmp.ne.s32.totalorder %s85, %s87
    %p91 = scmp.eq.s32.totalorder %s9, 0
    %p92 = por %p90, %p91
    %p93 = scmp.ne.s32.totalorder %s85, %s87
    %p94 = scmp.eq.s32.totalorder %s14, 1
    %p95 = por %p93, %p94
    %p96 = scmp.ne.s32.totalorder %s87, %s88
    %p97 = scmp.eq.s32.totalorder %s14, 0
    %p98 = por %p96, %p97
    %p99 = scmp.ne.s32.totalorder %s87, %s88
    %p100 = scmp.eq.s32.totalorder %s15, 1
    %p101 = por %p99, %p100
    %p103 = scmp.ne.s32.totalorder %s88, %s102
    %p104 = scmp.eq.s32.totalorder %s15, 0
    %p105 = por %p103, %p104
    %s106 = smul.u32 %s17, %s16
    %s107 = smul.u32 %s18, %s16
    %s108 = smul.u32 %s31, %s35
    %s109 = smul.u32 %s27, %s35
    %s110 = ssub.s32 %s106, %s108
    %s111 = ssub.s32 %s107, %s109
    %s112 = sor.u32 %s110, %s111
    %p113 = scmp.eq.s32.totalorder %s112, 0
    %s115 = sadd.s32 %s114, 1
    %s116 = scalar_select %p113, %s114, %s115
    %p119 = pneg %p113
    %p120 = scmp.eq.s32.totalorder %s9, 1
    %p121 = por %p119, %p120
    %p122 = scmp.ne.s32.totalorder %s114, %s117
    %p123 = scmp.eq.s32.totalorder %s9, 0
    %p124 = por %p122, %p123
    %p125 = scmp.ne.s32.totalorder %s114, %s117
    %p126 = scmp.eq.s32.totalorder %s14, 1
    %p127 = por %p125, %p126
    %p128 = scmp.ne.s32.totalorder %s117, %s118
    %p129 = scmp.eq.s32.totalorder %s14, 0
    %p130 = por %p128, %p129
    %p131 = scmp.ne.s32.totalorder %s117, %s118
    %p132 = scmp.eq.s32.totalorder %s15, 1
    %p133 = por %p131, %p132
    %p135 = scmp.ne.s32.totalorder %s118, %s134
    %p136 = scmp.eq.s32.totalorder %s15, 0
    %p137 = por %p135, %p136
    %p138 = scmp.le.s32.totalorder 1, %s9
    %p139 = scmp.lt.s32.totalorder %s9, 3
    %p140 = pnand %p138, %p139
    %p141 = pneg %p140
    // Predicated region
    $region9: #{tpu_custom_call.1} parent=5 // pred_check
      _
    $region10: #{tpu_custom_call.1} parent=5 // pred_check_branch
      %143 = sbr.rel (%p140) target = $region12
    $region11: #{tpu_custom_call.1} parent=5 // pred_region
      %s144 = ssub.s32 %s9, 1
      // Predicated region
      $region13: #{tpu_custom_call.1} parent=11 // pred_check
        %p145 = pneg %p56
      $region14: #{tpu_custom_call.1} parent=11 // pred_check_branch
        %147 = sbr.rel (%p145) target = $region16
      $region15: #{tpu_custom_call.1} parent=11 // pred_region
        %s148 = smul.u32 2, %s20
        %s149 = smul.u32 2, %s21
        %p150 = scmp.lt.s32.totalorder %s148, 1
        %s151 = scalar_select %p150, %s148, 1
        %p152 = scmp.lt.s32.totalorder %s149, 1
        %s153 = scalar_select %p152, %s149, 1
        %s154 = smul.addr %s151, 26
        %s155 = sadd.s32 %s153, %s154
        %s156 = smul.addr %s155, 8
        %s157 = scalar_lea.vmem %s0, %s156
        %s158 = smul.u32 2, %s20
        %s159 = smul.u32 2, %s21
      $region16: #{tpu_custom_call.1} parent=11 // pred_fallthru
        _
      // Predicated region
      $region17: #{tpu_custom_call.1} parent=11 // pred_check
        %p160 = pneg %p77
      $region18: #{tpu_custom_call.1} parent=11 // pred_check_branch
        %162 = sbr.rel (%p160) target = $region20
      $region19: #{tpu_custom_call.1} parent=11 // pred_region
        _
      $region20: #{tpu_custom_call.1} parent=11 // pred_fallthru
        _
      // Predicated region
      $region21: #{tpu_custom_call.1} parent=11 // pred_check
        %p163 = pneg %p98
      $region22: #{tpu_custom_call.1} parent=11 // pred_check_branch
        %165 = sbr.rel (%p163) target = $region24
      $region23: #{tpu_custom_call.1} parent=11 // pred_region
        _
      $region24: #{tpu_custom_call.1} parent=11 // pred_fallthru
        _
    $region12: #{tpu_custom_call.1} parent=5 // pred_fallthru
      _
    %p166 = scmp.lt.s32.totalorder %s9, 2
    // Predicated region
    $region25: #{tpu_custom_call.1} parent=5 // pred_check
      %p167 = pneg %p166
    $region26: #{tpu_custom_call.1} parent=5 // pred_check_branch
      %169 = sbr.rel (%p167) target = $region28
    $region27: #{tpu_custom_call.1} parent=5 // pred_region
      _
    $region28: #{tpu_custom_call.1} parent=5 // pred_fallthru
      _
    %p170 = scmp.le.s32.totalorder 1, %s9
    %p171 = scmp.lt.s32.totalorder %s9, 3
    %p172 = pnand %p170, %p171
    %p173 = pneg %p172
    // Predicated region
    $region29: #{tpu_custom_call.1} parent=5 // pred_check
      _
    $region30: #{tpu_custom_call.1} parent=5 // pred_check_branch
      %175 = sbr.rel (%p172) target = $region32
    $region31: #{tpu_custom_call.1} parent=5 // pred_region
      %s176 = ssub.s32 %s9, 1
      %s177 = smul.u32 2, %s20
      %s178 = smul.u32 2, %s21
      %p179 = scmp.lt.s32.totalorder %s177, 1
      %s180 = scalar_select %p179, %s177, 1
      %p181 = scmp.lt.s32.totalorder %s178, 1
      %s182 = scalar_select %p181, %s178, 1
      %s183 = smul.addr %s180, 26
      %s184 = sadd.s32 %s182, %s183
      %s185 = smul.addr %s184, 8
      %s186 = scalar_lea.vmem %s0, %s185
      %p187 = pneg %p56
      %p188 = pneg %p53
      %p189 = pneg %p77
      %p190 = pneg %p74
      %p191 = pneg %p98
      %p192 = pneg %p95
      %p193 = pneg %p130
      %p194 = pneg %p127
      %s195 = smul.u32 %s20, %s19
      %s196 = smul.u32 %s21, %s19
      %s197 = smul.u32 2, %s195
      %s198 = smul.u32 2, %s196
      %p199 = scmp.lt.s32.totalorder %s197, 1
      %s200 = scalar_select %p199, %s197, 1
      %p201 = scmp.lt.s32.totalorder %s198, 1
      %s202 = scalar_select %p201, %s198, 1
      %s203 = smul.addr %s200, 26
      %s204 = sadd.s32 %s202, %s203
      %s205 = smul.addr %s204, 8
      %s206 = scalar_lea.vmem %s3, %s205
      %s207 = smul.u32 2, %s20
      %s208 = smul.u32 2, %s21
      %p209 = scmp.lt.s32.totalorder %s207, 1
      %s210 = scalar_select %p209, %s207, 1
      %p211 = scmp.lt.s32.totalorder %s208, 1
      %s212 = scalar_select %p211, %s208, 1
      %s213 = smul.addr %s210, 26
      %s214 = sadd.s32 %s212, %s213
      %s215 = smul.addr %s214, 8
      %s216 = scalar_lea.vmem %s0, %s215
      %s217 = smul.u32 2, %s20
      %s218 = smul.u32 2, %s21
      %s219 = smul.u32 %s20, %s19
      %s220 = smul.u32 %s21, %s19
      %s221 = smul.u32 2, %s219
      %s222 = smul.u32 2, %s220
      %p223 = scmp.lt.s32.totalorder %s221, 1
      %s224 = scalar_select %p223, %s221, 1
      %p225 = scmp.lt.s32.totalorder %s222, 1
      %s226 = scalar_select %p225, %s222, 1
      %s227 = smul.addr %s224, 26
      %s228 = sadd.s32 %s226, %s227
      %s229 = smul.addr %s228, 8
      %s230 = scalar_lea.vmem %s3, %s229
      %s231 = smul.u32 %s20, %s19
      %s232 = smul.u32 %s21, %s19
      %s233 = smul.u32 2, %s231
      %s234 = smul.u32 2, %s232
      %p235 = scmp.eq.s32.totalorder %s19, 0
      %p236 = scmp.eq.s32.totalorder %s20, 0
      %p237 = scmp.eq.s32.totalorder %s21, 0
      %p238 = pnand %p236, %p237
      %p239 = pneg %p238
      %p240 = pnand %p235, %p239
      %p241 = pneg %p240
      // Predicated region
      $region33: #{tpu_custom_call.1} parent=31 // pred_check
        _
      $region34: #{tpu_custom_call.1} parent=31 // pred_check_branch
        %243 = sbr.rel (%p240) target = $region36
      $region35: #{tpu_custom_call.1} parent=31 // pred_region
        %vm244 = vcmask 7168
        %245 = vst.msk [vmem:[#allocation2] sm:$0xff] %vm244, 0.0
        %246 = vst.msk [vmem:[#allocation2 + $0x8] sm:$0xff] %vm244, 0.0
        %247 = vst.msk [vmem:[#allocation2 + $0x10] sm:$0xff] %vm244, 0.0
        %248 = vst.msk [vmem:[#allocation2 + $0x18] sm:$0xff] %vm244, 0.0
        %249 = vst.msk [vmem:[#allocation2 + $0x20] sm:$0xff] %vm244, 0.0
        %250 = vst.msk [vmem:[#allocation2 + $0x28] sm:$0xff] %vm244, 0.0
        %251 = vst.msk [vmem:[#allocation2 + $0x30] sm:$0xff] %vm244, 0.0
        %252 = vst.msk [vmem:[#allocation2 + $0x38] sm:$0xff] %vm244, 0.0
        %253 = vst.msk [vmem:[#allocation2 + $0x40] sm:$0xff] %vm244, 0.0
        %254 = vst.msk [vmem:[#allocation2 + $0x48] sm:$0xff] %vm244, 0.0
        %255 = vst.msk [vmem:[#allocation2 + $0x50] sm:$0xff] %vm244, 0.0
        %256 = vst.msk [vmem:[#allocation2 + $0x58] sm:$0xff] %vm244, 0.0
        %vm257 = vcmask 3072
        %258 = vst.msk [vmem:[#allocation2 + $0x60] sm:$0xf] %vm257, 0.0
        %259 = vst.msk [vmem:[#allocation3] sm:$0xff] %vm244, 0.0
        %260 = vst.msk [vmem:[#allocation3 + $0x8] sm:$0xff] %vm244, 0.0
        %261 = vst.msk [vmem:[#allocation3 + $0x10] sm:$0xff] %vm244, 0.0
        %262 = vst.msk [vmem:[#allocation3 + $0x18] sm:$0xff] %vm244, 0.0
        %263 = vst.msk [vmem:[#allocation3 + $0x20] sm:$0xff] %vm244, 0.0
        %264 = vst.msk [vmem:[#allocation3 + $0x28] sm:$0xff] %vm244, 0.0
        %265 = vst.msk [vmem:[#allocation3 + $0x30] sm:$0xff] %vm244, 0.0
        %266 = vst.msk [vmem:[#allocation3 + $0x38] sm:$0xff] %vm244, 0.0
        %267 = vst.msk [vmem:[#allocation3 + $0x40] sm:$0xff] %vm244, 0.0
        %268 = vst.msk [vmem:[#allocation3 + $0x48] sm:$0xff] %vm244, 0.0
        %269 = vst.msk [vmem:[#allocation3 + $0x50] sm:$0xff] %vm244, 0.0
        %270 = vst.msk [vmem:[#allocation3 + $0x58] sm:$0xff] %vm244, 0.0
        %271 = vst.msk [vmem:[#allocation3 + $0x60] sm:$0xf] %vm257, 0.0
      $region36: #{tpu_custom_call.1} parent=31 // pred_fallthru
        _
      // Predicated region
      $region37: #{tpu_custom_call.1} parent=31 // pred_check
        %p272 = pneg %p235
      $region38: #{tpu_custom_call.1} parent=31 // pred_check_branch
        %274 = sbr.rel (%p272) target = $region40
      $region39: #{tpu_custom_call.1} parent=31 // pred_region
        %v275 = vld [vmem:[%s216] sm:$0xff]
        %v276 = vld [vmem:[%s216 + $0x8] sm:$0xff]
        %v277 = vld [vmem:[%s216 + $0x10] sm:$0xff]
        %v278 = vld [vmem:[%s216 + $0x18] sm:$0xff]
        %v279 = vld [vmem:[%s216 + $0x20] sm:$0xff]
        %v280 = vld [vmem:[%s216 + $0x28] sm:$0xff]
        %v281 = vld [vmem:[%s216 + $0x30] sm:$0xff]
        %v282 = vld [vmem:[%s216 + $0x38] sm:$0xff]
        %v283 = vld [vmem:[%s216 + $0x40] sm:$0xff]
        %v284 = vld [vmem:[%s216 + $0x48] sm:$0xff]
        %v285 = vld [vmem:[%s216 + $0x50] sm:$0xff]
        %v286 = vld [vmem:[%s216 + $0x58] sm:$0xff]
        %v287 = vld [vmem:[%s216 + $0x60] sm:$0xff]
        %v288 = vld [vmem:[%s216 + $0x68] sm:$0xff]
        %v289 = vld [vmem:[%s216 + $0x70] sm:$0xff]
        %v290 = vld [vmem:[%s216 + $0x78] sm:$0xff]
        %v291 = vld [vmem:[%s216 + $0x80] sm:$0xff]
        %v292 = vld [vmem:[%s216 + $0x88] sm:$0xff]
        %v293 = vld [vmem:[%s216 + $0x90] sm:$0xff]
        %v294 = vld [vmem:[%s216 + $0x98] sm:$0xff]
        %v295 = vld [vmem:[%s216 + $0xa0] sm:$0xff]
        %v296 = vld [vmem:[%s216 + $0xa8] sm:$0xff]
        %v297 = vld [vmem:[%s216 + $0xb0] sm:$0xff]
        %v298 = vld [vmem:[%s216 + $0xb8] sm:$0xff]
        %v299 = vld [vmem:[%s216 + $0xc0] sm:$0xf]
        %v300 = vld [vmem:[%s216 + $0xc8] sm:$0xf]
        %v301 = vld [vmem:[%s216 + $0xd0] sm:$0xff]
        %v302 = vld [vmem:[%s216 + $0xd8] sm:$0xff]
        %v303 = vld [vmem:[%s216 + $0xe0] sm:$0xff]
        %v304 = vld [vmem:[%s216 + $0xe8] sm:$0xff]
        %v305 = vld [vmem:[%s216 + $0xf0] sm:$0xff]
        %v306 = vld [vmem:[%s216 + $0xf8] sm:$0xff]
        %v307 = vld [vmem:[%s216 + $0x100] sm:$0xff]
        %v308 = vld [vmem:[%s216 + $0x108] sm:$0xff]
        %v309 = vld [vmem:[%s216 + $0x110] sm:$0xff]
        %v310 = vld [vmem:[%s216 + $0x118] sm:$0xff]
        %v311 = vld [vmem:[%s216 + $0x120] sm:$0xff]
        %v312 = vld [vmem:[%s216 + $0x128] sm:$0xff]
        %v313 = vld [vmem:[%s216 + $0x130] sm:$0xff]
        %v314 = vld [vmem:[%s216 + $0x138] sm:$0xff]
        %v315 = vld [vmem:[%s216 + $0x140] sm:$0xff]
        %v316 = vld [vmem:[%s216 + $0x148] sm:$0xff]
        %v317 = vld [vmem:[%s216 + $0x150] sm:$0xff]
        %v318 = vld [vmem:[%s216 + $0x158] sm:$0xff]
        %v319 = vld [vmem:[%s216 + $0x160] sm:$0xff]
        %v320 = vld [vmem:[%s216 + $0x168] sm:$0xff]
        %v321 = vld [vmem:[%s216 + $0x170] sm:$0xff]
        %v322 = vld [vmem:[%s216 + $0x178] sm:$0xff]
        %v323 = vld [vmem:[%s216 + $0x180] sm:$0xff]
        %v324 = vld [vmem:[%s216 + $0x188] sm:$0xff]
        %v325 = vld [vmem:[%s216 + $0x190] sm:$0xf]
        %v326 = vld [vmem:[%s216 + $0x198] sm:$0xf]
        %v327 = vadd.f32 %v275, %v301
        %v328 = vadd.f32 %v276, %v302
        %v329 = vadd.f32 %v277, %v303
        %v330 = vadd.f32 %v278, %v304
        %v331 = vadd.f32 %v279, %v305
        %v332 = vadd.f32 %v280, %v306
        %v333 = vadd.f32 %v281, %v307
        %v334 = vadd.f32 %v282, %v308
        %v335 = vadd.f32 %v283, %v309
        %v336 = vadd.f32 %v284, %v310
        %v337 = vadd.f32 %v285, %v311
        %v338 = vadd.f32 %v286, %v312
        %v339 = vadd.f32 %v287, %v313
        %v340 = vadd.f32 %v288, %v314
        %v341 = vadd.f32 %v289, %v315
        %v342 = vadd.f32 %v290, %v316
        %v343 = vadd.f32 %v291, %v317
        %v344 = vadd.f32 %v292, %v318
        %v345 = vadd.f32 %v293, %v319
        %v346 = vadd.f32 %v294, %v320
        %v347 = vadd.f32 %v295, %v321
        %v348 = vadd.f32 %v296, %v322
        %v349 = vadd.f32 %v297, %v323
        %v350 = vadd.f32 %v298, %v324
        %vm351 = vcmask 1043456
        %v352 = vsel %vm351, %v299, 0.0
        %v353 = vsel %vm351, %v325, 0.0
        %v354 = vadd.f32 %v352, %v353
        %v355 = vsel %vm351, %v300, 0.0
        %v356 = vsel %vm351, %v326, 0.0
        %v357 = vadd.f32 %v355, %v356
        %v358 = vmul.f32 %v275, %v275
        %v359 = vmul.f32 %v276, %v276
        %v360 = vmul.f32 %v277, %v277
        %v361 = vmul.f32 %v278, %v278
        %v362 = vmul.f32 %v279, %v279
        %v363 = vmul.f32 %v280, %v280
        %v364 = vmul.f32 %v281, %v281
        %v365 = vmul.f32 %v282, %v282
        %v366 = vmul.f32 %v283, %v283
        %v367 = vmul.f32 %v284, %v284
        %v368 = vmul.f32 %v285, %v285
        %v369 = vmul.f32 %v286, %v286
        %v370 = vmul.f32 %v287, %v287
        %v371 = vmul.f32 %v288, %v288
        %v372 = vmul.f32 %v289, %v289
        %v373 = vmul.f32 %v290, %v290
        %v374 = vmul.f32 %v291, %v291
        %v375 = vmul.f32 %v292, %v292
        %v376 = vmul.f32 %v293, %v293
        %v377 = vmul.f32 %v294, %v294
        %v378 = vmul.f32 %v295, %v295
        %v379 = vmul.f32 %v296, %v296
        %v380 = vmul.f32 %v297, %v297
        %v381 = vmul.f32 %v298, %v298
        %v382 = vmul.f32 %v299, %v299
        %v383 = vmul.f32 %v300, %v300
        %v384 = vmul.f32 %v301, %v301
        %v385 = vmul.f32 %v302, %v302
        %v386 = vmul.f32 %v303, %v303
        %v387 = vmul.f32 %v304, %v304
        %v388 = vmul.f32 %v305, %v305
        %v389 = vmul.f32 %v306, %v306
        %v390 = vmul.f32 %v307, %v307
        %v391 = vmul.f32 %v308, %v308
        %v392 = vmul.f32 %v309, %v309
        %v393 = vmul.f32 %v310, %v310
        %v394 = vmul.f32 %v311, %v311
        %v395 = vmul.f32 %v312, %v312
        %v396 = vmul.f32 %v313, %v313
        %v397 = vmul.f32 %v314, %v314
        %v398 = vmul.f32 %v315, %v315
        %v399 = vmul.f32 %v316, %v316
        %v400 = vmul.f32 %v317, %v317
        %v401 = vmul.f32 %v318, %v318
        %v402 = vmul.f32 %v319, %v319
        %v403 = vmul.f32 %v320, %v320
        %v404 = vmul.f32 %v321, %v321
        %v405 = vmul.f32 %v322, %v322
        %v406 = vmul.f32 %v323, %v323
        %v407 = vmul.f32 %v324, %v324
        %v408 = vmul.f32 %v325, %v325
        %v409 = vmul.f32 %v326, %v326
        %v410 = vadd.f32 %v358, %v384
        %v411 = vadd.f32 %v359, %v385
        %v412 = vadd.f32 %v360, %v386
        %v413 = vadd.f32 %v361, %v387
        %v414 = vadd.f32 %v362, %v388
        %v415 = vadd.f32 %v363, %v389
        %v416 = vadd.f32 %v364, %v390
        %v417 = vadd.f32 %v365, %v391
        %v418 = vadd.f32 %v366, %v392
        %v419 = vadd.f32 %v367, %v393
        %v420 = vadd.f32 %v368, %v394
        %v421 = vadd.f32 %v369, %v395
        %v422 = vadd.f32 %v370, %v396
        %v423 = vadd.f32 %v371, %v397
        %v424 = vadd.f32 %v372, %v398
        %v425 = vadd.f32 %v373, %v399
        %v426 = vadd.f32 %v374, %v400
        %v427 = vadd.f32 %v375, %v401
        %v428 = vadd.f32 %v376, %v402
        %v429 = vadd.f32 %v377, %v403
        %v430 = vadd.f32 %v378, %v404
        %v431 = vadd.f32 %v379, %v405
        %v432 = vadd.f32 %v380, %v406
        %v433 = vadd.f32 %v381, %v407
        %v434 = vsel %vm351, %v382, 0.0
        %v435 = vsel %vm351, %v408, 0.0
        %v436 = vadd.f32 %v434, %v435
        %v437 = vsel %vm351, %v383, 0.0
        %v438 = vsel %vm351, %v409, 0.0
        %v439 = vadd.f32 %v437, %v438
        %v440 = vld [vmem:[#allocation2] sm:$0xff]
        %v441 = vld [vmem:[#allocation2 + $0x8] sm:$0xff]
        %v442 = vld [vmem:[#allocation2 + $0x10] sm:$0xff]
        %v443 = vld [vmem:[#allocation2 + $0x18] sm:$0xff]
        %v444 = vld [vmem:[#allocation2 + $0x20] sm:$0xff]
        %v445 = vld [vmem:[#allocation2 + $0x28] sm:$0xff]
        %v446 = vld [vmem:[#allocation2 + $0x30] sm:$0xff]
        %v447 = vld [vmem:[#allocation2 + $0x38] sm:$0xff]
        %v448 = vld [vmem:[#allocation2 + $0x40] sm:$0xff]
        %v449 = vld [vmem:[#allocation2 + $0x48] sm:$0xff]
        %v450 = vld [vmem:[#allocation2 + $0x50] sm:$0xff]
        %v451 = vld [vmem:[#allocation2 + $0x58] sm:$0xff]
        %v452 = vld [vmem:[#allocation2 + $0x60] sm:$0xf]
        %v453 = vadd.f32 %v327, %v328
        %454 = vadd.xlane.f32.xlu0 %v453
        %v455 = vpop.xlane.xlu0 %454
        %v456 = vadd.f32 %v329, %v330
        %457 = vadd.xlane.f32.xlu0 %v456
        %v458 = vpop.xlane.xlu0 %457
        %v459 = vadd.f32 %v331, %v332
        %460 = vadd.xlane.f32.xlu0 %v459
        %v461 = vpop.xlane.xlu0 %460
        %v462 = vadd.f32 %v333, %v334
        %463 = vadd.xlane.f32.xlu0 %v462
        %v464 = vpop.xlane.xlu0 %463
        %v465 = vadd.f32 %v335, %v336
        %466 = vadd.xlane.f32.xlu0 %v465
        %v467 = vpop.xlane.xlu0 %466
        %v468 = vadd.f32 %v337, %v338
        %469 = vadd.xlane.f32.xlu0 %v468
        %v470 = vpop.xlane.xlu0 %469
        %v471 = vadd.f32 %v339, %v340
        %472 = vadd.xlane.f32.xlu0 %v471
        %v473 = vpop.xlane.xlu0 %472
        %v474 = vadd.f32 %v341, %v342
        %475 = vadd.xlane.f32.xlu0 %v474
        %v476 = vpop.xlane.xlu0 %475
        %v477 = vadd.f32 %v343, %v344
        %478 = vadd.xlane.f32.xlu0 %v477
        %v479 = vpop.xlane.xlu0 %478
        %v480 = vadd.f32 %v345, %v346
        %481 = vadd.xlane.f32.xlu0 %v480
        %v482 = vpop.xlane.xlu0 %481
        %v483 = vadd.f32 %v347, %v348
        %484 = vadd.xlane.f32.xlu0 %v483
        %v485 = vpop.xlane.xlu0 %484
        %v486 = vadd.f32 %v349, %v350
        %487 = vadd.xlane.f32.xlu0 %v486
        %v488 = vpop.xlane.xlu0 %487
        %v489 = vsel %vm351, %v354, 0.0
        %v490 = vsel %vm351, %v357, 0.0
        %v491 = vadd.f32 %v489, %v490
        %492 = vadd.xlane.f32.xlu0 %v491
        %v493 = vpop.xlane.xlu0 %492
        %v494 = vadd.f32 %v440, %v455
        %v495 = vadd.f32 %v441, %v458
        %v496 = vadd.f32 %v442, %v461
        %v497 = vadd.f32 %v443, %v464
        %v498 = vadd.f32 %v444, %v467
        %v499 = vadd.f32 %v445, %v470
        %v500 = vadd.f32 %v446, %v473
        %v501 = vadd.f32 %v447, %v476
        %v502 = vadd.f32 %v448, %v479
        %v503 = vadd.f32 %v449, %v482
        %v504 = vadd.f32 %v450, %v485
        %v505 = vadd.f32 %v451, %v488
        %v506 = vadd.f32 %v452, %v493
        %vm507 = vcmask 7168
        %508 = vst.msk [vmem:[#allocation2] sm:$0xff] %vm507, %v494
        %509 = vst.msk [vmem:[#allocation2 + $0x8] sm:$0xff] %vm507, %v495
        %510 = vst.msk [vmem:[#allocation2 + $0x10] sm:$0xff] %vm507, %v496
        %511 = vst.msk [vmem:[#allocation2 + $0x18] sm:$0xff] %vm507, %v497
        %512 = vst.msk [vmem:[#allocation2 + $0x20] sm:$0xff] %vm507, %v498
        %513 = vst.msk [vmem:[#allocation2 + $0x28] sm:$0xff] %vm507, %v499
        %514 = vst.msk [vmem:[#allocation2 + $0x30] sm:$0xff] %vm507, %v500
        %515 = vst.msk [vmem:[#allocation2 + $0x38] sm:$0xff] %vm507, %v501
        %516 = vst.msk [vmem:[#allocation2 + $0x40] sm:$0xff] %vm507, %v502
        %517 = vst.msk [vmem:[#allocation2 + $0x48] sm:$0xff] %vm507, %v503
        %518 = vst.msk [vmem:[#allocation2 + $0x50] sm:$0xff] %vm507, %v504
        %519 = vst.msk [vmem:[#allocation2 + $0x58] sm:$0xff] %vm507, %v505
        %vm520 = vcmask 3072
        %521 = vst.msk [vmem:[#allocation2 + $0x60] sm:$0xf] %vm520, %v506
        %v522 = vld [vmem:[#allocation3] sm:$0xff]
        %v523 = vld [vmem:[#allocation3 + $0x8] sm:$0xff]
        %v524 = vld [vmem:[#allocation3 + $0x10] sm:$0xff]
        %v525 = vld [vmem:[#allocation3 + $0x18] sm:$0xff]
        %v526 = vld [vmem:[#allocation3 + $0x20] sm:$0xff]
        %v527 = vld [vmem:[#allocation3 + $0x28] sm:$0xff]
        %v528 = vld [vmem:[#allocation3 + $0x30] sm:$0xff]
        %v529 = vld [vmem:[#allocation3 + $0x38] sm:$0xff]
        %v530 = vld [vmem:[#allocation3 + $0x40] sm:$0xff]
        %v531 = vld [vmem:[#allocation3 + $0x48] sm:$0xff]
        %v532 = vld [vmem:[#allocation3 + $0x50] sm:$0xff]
        %v533 = vld [vmem:[#allocation3 + $0x58] sm:$0xff]
        %v534 = vld [vmem:[#allocation3 + $0x60] sm:$0xf]
        %v535 = vadd.f32 %v410, %v411
        %536 = vadd.xlane.f32.xlu0 %v535
        %v537 = vpop.xlane.xlu0 %536
        %v538 = vadd.f32 %v412, %v413
        %539 = vadd.xlane.f32.xlu0 %v538
        %v540 = vpop.xlane.xlu0 %539
        %v541 = vadd.f32 %v414, %v415
        %542 = vadd.xlane.f32.xlu0 %v541
        %v543 = vpop.xlane.xlu0 %542
        %v544 = vadd.f32 %v416, %v417
        %545 = vadd.xlane.f32.xlu0 %v544
        %v546 = vpop.xlane.xlu0 %545
        %v547 = vadd.f32 %v418, %v419
        %548 = vadd.xlane.f32.xlu0 %v547
        %v549 = vpop.xlane.xlu0 %548
        %v550 = vadd.f32 %v420, %v421
        %551 = vadd.xlane.f32.xlu0 %v550
        %v552 = vpop.xlane.xlu0 %551
        %v553 = vadd.f32 %v422, %v423
        %554 = vadd.xlane.f32.xlu0 %v553
        %v555 = vpop.xlane.xlu0 %554
        %v556 = vadd.f32 %v424, %v425
        %557 = vadd.xlane.f32.xlu0 %v556
        %v558 = vpop.xlane.xlu0 %557
        %v559 = vadd.f32 %v426, %v427
        %560 = vadd.xlane.f32.xlu0 %v559
        %v561 = vpop.xlane.xlu0 %560
        %v562 = vadd.f32 %v428, %v429
        %563 = vadd.xlane.f32.xlu0 %v562
        %v564 = vpop.xlane.xlu0 %563
        %v565 = vadd.f32 %v430, %v431
        %566 = vadd.xlane.f32.xlu0 %v565
        %v567 = vpop.xlane.xlu0 %566
        %v568 = vadd.f32 %v432, %v433
        %569 = vadd.xlane.f32.xlu0 %v568
        %v570 = vpop.xlane.xlu0 %569
        %v571 = vsel %vm351, %v436, 0.0
        %v572 = vsel %vm351, %v439, 0.0
        %v573 = vadd.f32 %v571, %v572
        %574 = vadd.xlane.f32.xlu0 %v573
        %v575 = vpop.xlane.xlu0 %574
        %v576 = vadd.f32 %v522, %v537
        %v577 = vadd.f32 %v523, %v540
        %v578 = vadd.f32 %v524, %v543
        %v579 = vadd.f32 %v525, %v546
        %v580 = vadd.f32 %v526, %v549
        %v581 = vadd.f32 %v527, %v552
        %v582 = vadd.f32 %v528, %v555
        %v583 = vadd.f32 %v529, %v558
        %v584 = vadd.f32 %v530, %v561
        %v585 = vadd.f32 %v531, %v564
        %v586 = vadd.f32 %v532, %v567
        %v587 = vadd.f32 %v533, %v570
        %v588 = vadd.f32 %v534, %v575
        %589 = vst.msk [vmem:[#allocation3] sm:$0xff] %vm507, %v576
        %590 = vst.msk [vmem:[#allocation3 + $0x8] sm:$0xff] %vm507, %v577
        %591 = vst.msk [vmem:[#allocation3 + $0x10] sm:$0xff] %vm507, %v578
        %592 = vst.msk [vmem:[#allocation3 + $0x18] sm:$0xff] %vm507, %v579
        %593 = vst.msk [vmem:[#allocation3 + $0x20] sm:$0xff] %vm507, %v580
        %594 = vst.msk [vmem:[#allocation3 + $0x28] sm:$0xff] %vm507, %v581
        %595 = vst.msk [vmem:[#allocation3 + $0x30] sm:$0xff] %vm507, %v582
        %596 = vst.msk [vmem:[#allocation3 + $0x38] sm:$0xff] %vm507, %v583
        %597 = vst.msk [vmem:[#allocation3 + $0x40] sm:$0xff] %vm507, %v584
        %598 = vst.msk [vmem:[#allocation3 + $0x48] sm:$0xff] %vm507, %v585
        %599 = vst.msk [vmem:[#allocation3 + $0x50] sm:$0xff] %vm507, %v586
        %600 = vst.msk [vmem:[#allocation3 + $0x58] sm:$0xff] %vm507, %v587
        %601 = vst.msk [vmem:[#allocation3 + $0x60] sm:$0xf] %vm520, %v588
      $region40: #{tpu_custom_call.1} parent=31 // pred_fallthru
        _
      // Predicated region
      $region41: #{tpu_custom_call.1} parent=31 // pred_check
        _
      $region42: #{tpu_custom_call.1} parent=31 // pred_check_branch
        %603 = sbr.rel (%p240) target = $region44
      $region43: #{tpu_custom_call.1} parent=31 // pred_region
        %v604 = vld [vmem:[#allocation2] sm:$0xff]
        %v605 = vld [vmem:[#allocation2 + $0x8] sm:$0xff]
        %v606 = vld [vmem:[#allocation2 + $0x10] sm:$0xff]
        %v607 = vld [vmem:[#allocation2 + $0x18] sm:$0xff]
        %v608 = vld [vmem:[#allocation2 + $0x20] sm:$0xff]
        %v609 = vld [vmem:[#allocation2 + $0x28] sm:$0xff]
        %v610 = vld [vmem:[#allocation2 + $0x30] sm:$0xff]
        %v611 = vld [vmem:[#allocation2 + $0x38] sm:$0xff]
        %v612 = vld [vmem:[#allocation2 + $0x40] sm:$0xff]
        %v613 = vld [vmem:[#allocation2 + $0x48] sm:$0xff]
        %v614 = vld [vmem:[#allocation2 + $0x50] sm:$0xff]
        %v615 = vld [vmem:[#allocation2 + $0x58] sm:$0xff]
        %v616 = vld [vmem:[#allocation2 + $0x60] sm:$0xf]
        %v617 = vmul.f32 %v604, 0.001953125
        %v618 = vmul.f32 %v605, 0.001953125
        %v619 = vmul.f32 %v606, 0.001953125
        %v620 = vmul.f32 %v607, 0.001953125
        %v621 = vmul.f32 %v608, 0.001953125
        %v622 = vmul.f32 %v609, 0.001953125
        %v623 = vmul.f32 %v610, 0.001953125
        %v624 = vmul.f32 %v611, 0.001953125
        %v625 = vmul.f32 %v612, 0.001953125
        %v626 = vmul.f32 %v613, 0.001953125
        %v627 = vmul.f32 %v614, 0.001953125
        %v628 = vmul.f32 %v615, 0.001953125
        %v629 = vmul.f32 %v616, 0.001953125
        %v630 = vld [vmem:[#allocation3] sm:$0xff]
        %v631 = vld [vmem:[#allocation3 + $0x8] sm:$0xff]
        %v632 = vld [vmem:[#allocation3 + $0x10] sm:$0xff]
        %v633 = vld [vmem:[#allocation3 + $0x18] sm:$0xff]
        %v634 = vld [vmem:[#allocation3 + $0x20] sm:$0xff]
        %v635 = vld [vmem:[#allocation3 + $0x28] sm:$0xff]
        %v636 = vld [vmem:[#allocation3 + $0x30] sm:$0xff]
        %v637 = vld [vmem:[#allocation3 + $0x38] sm:$0xff]
        %v638 = vld [vmem:[#allocation3 + $0x40] sm:$0xff]
        %v639 = vld [vmem:[#allocation3 + $0x48] sm:$0xff]
        %v640 = vld [vmem:[#allocation3 + $0x50] sm:$0xff]
        %v641 = vld [vmem:[#allocation3 + $0x58] sm:$0xff]
        %v642 = vld [vmem:[#allocation3 + $0x60] sm:$0xf]
        %v643 = vmul.f32 %v630, 0.001953125
        %v644 = vmul.f32 %v631, 0.001953125
        %v645 = vmul.f32 %v632, 0.001953125
        %v646 = vmul.f32 %v633, 0.001953125
        %v647 = vmul.f32 %v634, 0.001953125
        %v648 = vmul.f32 %v635, 0.001953125
        %v649 = vmul.f32 %v636, 0.001953125
        %v650 = vmul.f32 %v637, 0.001953125
        %v651 = vmul.f32 %v638, 0.001953125
        %v652 = vmul.f32 %v639, 0.001953125
        %v653 = vmul.f32 %v640, 0.001953125
        %v654 = vmul.f32 %v641, 0.001953125
        %v655 = vmul.f32 %v642, 0.001953125
        %v656 = vmul.f32 %v617, %v617
        %v657 = vmul.f32 %v618, %v618
        %v658 = vmul.f32 %v619, %v619
        %v659 = vmul.f32 %v620, %v620
        %v660 = vmul.f32 %v621, %v621
        %v661 = vmul.f32 %v622, %v622
        %v662 = vmul.f32 %v623, %v623
        %v663 = vmul.f32 %v624, %v624
        %v664 = vmul.f32 %v625, %v625
        %v665 = vmul.f32 %v626, %v626
        %v666 = vmul.f32 %v627, %v627
        %v667 = vmul.f32 %v628, %v628
        %v668 = vmul.f32 %v629, %v629
        %v669 = vsub.f32 %v643, %v656
        %v670 = vsub.f32 %v644, %v657
        %v671 = vsub.f32 %v645, %v658
        %v672 = vsub.f32 %v646, %v659
        %v673 = vsub.f32 %v647, %v660
        %v674 = vsub.f32 %v648, %v661
        %v675 = vsub.f32 %v649, %v662
        %v676 = vsub.f32 %v650, %v663
        %v677 = vsub.f32 %v651, %v664
        %v678 = vsub.f32 %v652, %v665
        %v679 = vsub.f32 %v653, %v666
        %v680 = vsub.f32 %v654, %v667
        %v681 = vsub.f32 %v655, %v668
        %v682 = vadd.f32 %v669, 1e-05
        %v683 = vadd.f32 %v670, 1e-05
        %v684 = vadd.f32 %v671, 1e-05
        %v685 = vadd.f32 %v672, 1e-05
        %v686 = vadd.f32 %v673, 1e-05
        %v687 = vadd.f32 %v674, 1e-05
        %v688 = vadd.f32 %v675, 1e-05
        %v689 = vadd.f32 %v676, 1e-05
        %v690 = vadd.f32 %v677, 1e-05
        %v691 = vadd.f32 %v678, 1e-05
        %v692 = vadd.f32 %v679, 1e-05
        %v693 = vadd.f32 %v680, 1e-05
        %v694 = vadd.f32 %v681, 1e-05
        %v695 = vrsqrt.pop %v682
        %v696 = vrsqrt.pop %v683
        %v697 = vrsqrt.pop %v684
        %v698 = vrsqrt.pop %v685
        %v699 = vrsqrt.pop %v686
        %v700 = vrsqrt.pop %v687
        %v701 = vrsqrt.pop %v688
        %v702 = vrsqrt.pop %v689
        %v703 = vrsqrt.pop %v690
        %v704 = vrsqrt.pop %v691
        %v705 = vrsqrt.pop %v692
        %v706 = vrsqrt.pop %v693
        %v707 = vrsqrt.pop %v694
        %v708 = vld [vmem:[%s1] sm:$0xff]
        %v709 = vld [vmem:[%s1 + $0x8] sm:$0xff]
        %v710 = vld [vmem:[%s1 + $0x10] sm:$0xff]
        %v711 = vld [vmem:[%s1 + $0x18] sm:$0xff]
        %v712 = vld [vmem:[%s1 + $0x20] sm:$0xff]
        %v713 = vld [vmem:[%s1 + $0x28] sm:$0xff]
        %v714 = vld [vmem:[%s1 + $0x30] sm:$0xff]
        %v715 = vld [vmem:[%s1 + $0x38] sm:$0xff]
        %v716 = vld [vmem:[%s1 + $0x40] sm:$0xff]
        %v717 = vld [vmem:[%s1 + $0x48] sm:$0xff]
        %v718 = vld [vmem:[%s1 + $0x50] sm:$0xff]
        %v719 = vld [vmem:[%s1 + $0x58] sm:$0xff]
        %v720 = vld [vmem:[%s1 + $0x60] sm:$0xf]
        %v721 = vmul.f32 %v708, %v695
        %v722 = vmul.f32 %v709, %v696
        %v723 = vmul.f32 %v710, %v697
        %v724 = vmul.f32 %v711, %v698
        %v725 = vmul.f32 %v712, %v699
        %v726 = vmul.f32 %v713, %v700
        %v727 = vmul.f32 %v714, %v701
        %v728 = vmul.f32 %v715, %v702
        %v729 = vmul.f32 %v716, %v703
        %v730 = vmul.f32 %v717, %v704
        %v731 = vmul.f32 %v718, %v705
        %v732 = vmul.f32 %v719, %v706
        %v733 = vmul.f32 %v720, %v707
        %vm734 = vcmask 7168
        %735 = vst.msk [vmem:[#allocation4] sm:$0xff] %vm734, %v721
        %736 = vst.msk [vmem:[#allocation4 + $0x8] sm:$0xff] %vm734, %v722
        %737 = vst.msk [vmem:[#allocation4 + $0x10] sm:$0xff] %vm734, %v723
        %738 = vst.msk [vmem:[#allocation4 + $0x18] sm:$0xff] %vm734, %v724
        %739 = vst.msk [vmem:[#allocation4 + $0x20] sm:$0xff] %vm734, %v725
        %740 = vst.msk [vmem:[#allocation4 + $0x28] sm:$0xff] %vm734, %v726
        %741 = vst.msk [vmem:[#allocation4 + $0x30] sm:$0xff] %vm734, %v727
        %742 = vst.msk [vmem:[#allocation4 + $0x38] sm:$0xff] %vm734, %v728
        %743 = vst.msk [vmem:[#allocation4 + $0x40] sm:$0xff] %vm734, %v729
        %744 = vst.msk [vmem:[#allocation4 + $0x48] sm:$0xff] %vm734, %v730
        %745 = vst.msk [vmem:[#allocation4 + $0x50] sm:$0xff] %vm734, %v731
        %746 = vst.msk [vmem:[#allocation4 + $0x58] sm:$0xff] %vm734, %v732
        %vm747 = vcmask 3072
        %748 = vst.msk [vmem:[#allocation4 + $0x60] sm:$0xf] %vm747, %v733
        %v749 = vld [vmem:[%s2] sm:$0xff]
        %v750 = vld [vmem:[%s2 + $0x8] sm:$0xff]
        %v751 = vld [vmem:[%s2 + $0x10] sm:$0xff]
        %v752 = vld [vmem:[%s2 + $0x18] sm:$0xff]
        %v753 = vld [vmem:[%s2 + $0x20] sm:$0xff]
        %v754 = vld [vmem:[%s2 + $0x28] sm:$0xff]
        %v755 = vld [vmem:[%s2 + $0x30] sm:$0xff]
        %v756 = vld [vmem:[%s2 + $0x38] sm:$0xff]
        %v757 = vld [vmem:[%s2 + $0x40] sm:$0xff]
        %v758 = vld [vmem:[%s2 + $0x48] sm:$0xff]
        %v759 = vld [vmem:[%s2 + $0x50] sm:$0xff]
        %v760 = vld [vmem:[%s2 + $0x58] sm:$0xff]
        %v761 = vld [vmem:[%s2 + $0x60] sm:$0xf]
        %v762 = vmul.f32 %v617, %v721
        %v763 = vmul.f32 %v618, %v722
        %v764 = vmul.f32 %v619, %v723
        %v765 = vmul.f32 %v620, %v724
        %v766 = vmul.f32 %v621, %v725
        %v767 = vmul.f32 %v622, %v726
        %v768 = vmul.f32 %v623, %v727
        %v769 = vmul.f32 %v624, %v728
        %v770 = vmul.f32 %v625, %v729
        %v771 = vmul.f32 %v626, %v730
        %v772 = vmul.f32 %v627, %v731
        %v773 = vmul.f32 %v628, %v732
        %v774 = vmul.f32 %v629, %v733
        %v775 = vsub.f32 %v749, %v762
        %v776 = vsub.f32 %v750, %v763
        %v777 = vsub.f32 %v751, %v764
        %v778 = vsub.f32 %v752, %v765
        %v779 = vsub.f32 %v753, %v766
        %v780 = vsub.f32 %v754, %v767
        %v781 = vsub.f32 %v755, %v768
        %v782 = vsub.f32 %v756, %v769
        %v783 = vsub.f32 %v757, %v770
        %v784 = vsub.f32 %v758, %v771
        %v785 = vsub.f32 %v759, %v772
        %v786 = vsub.f32 %v760, %v773
        %v787 = vsub.f32 %v761, %v774
        %788 = vst.msk [vmem:[#allocation5] sm:$0xff] %vm734, %v775
        %789 = vst.msk [vmem:[#allocation5 + $0x8] sm:$0xff] %vm734, %v776
        %790 = vst.msk [vmem:[#allocation5 + $0x10] sm:$0xff] %vm734, %v777
        %791 = vst.msk [vmem:[#allocation5 + $0x18] sm:$0xff] %vm734, %v778
        %792 = vst.msk [vmem:[#allocation5 + $0x20] sm:$0xff] %vm734, %v779
        %793 = vst.msk [vmem:[#allocation5 + $0x28] sm:$0xff] %vm734, %v780
        %794 = vst.msk [vmem:[#allocation5 + $0x30] sm:$0xff] %vm734, %v781
        %795 = vst.msk [vmem:[#allocation5 + $0x38] sm:$0xff] %vm734, %v782
        %796 = vst.msk [vmem:[#allocation5 + $0x40] sm:$0xff] %vm734, %v783
        %797 = vst.msk [vmem:[#allocation5 + $0x48] sm:$0xff] %vm734, %v784
        %798 = vst.msk [vmem:[#allocation5 + $0x50] sm:$0xff] %vm734, %v785
        %799 = vst.msk [vmem:[#allocation5 + $0x58] sm:$0xff] %vm734, %v786
        %800 = vst.msk [vmem:[#allocation5 + $0x60] sm:$0xf] %vm747, %v787
      $region44: #{tpu_custom_call.1} parent=31 // pred_fallthru
        _
      %p801 = scmp.eq.s32.totalorder %s19, 1
      // Predicated region
      $region45: #{tpu_custom_call.1} parent=31 // pred_check
        %p802 = pneg %p801
      $region46: #{tpu_custom_call.1} parent=31 // pred_check_branch
        %804 = sbr.rel (%p802) target = $region48
      $region47: #{tpu_custom_call.1} parent=31 // pred_region
        %v805 = vld [vmem:[%s216] sm:$0xff]
        %v806 = vld [vmem:[%s216 + $0x8] sm:$0xff]
        %v807 = vld [vmem:[%s216 + $0x10] sm:$0xff]
        %v808 = vld [vmem:[%s216 + $0x18] sm:$0xff]
        %v809 = vld [vmem:[%s216 + $0x20] sm:$0xff]
        %v810 = vld [vmem:[%s216 + $0x28] sm:$0xff]
        %v811 = vld [vmem:[%s216 + $0x30] sm:$0xff]
        %v812 = vld [vmem:[%s216 + $0x38] sm:$0xff]
        %v813 = vld [vmem:[%s216 + $0x40] sm:$0xff]
        %v814 = vld [vmem:[%s216 + $0x48] sm:$0xff]
        %v815 = vld [vmem:[%s216 + $0x50] sm:$0xff]
        %v816 = vld [vmem:[%s216 + $0x58] sm:$0xff]
        %v817 = vld [vmem:[%s216 + $0x60] sm:$0xff]
        %v818 = vld [vmem:[%s216 + $0x68] sm:$0xff]
        %v819 = vld [vmem:[%s216 + $0x70] sm:$0xff]
        %v820 = vld [vmem:[%s216 + $0x78] sm:$0xff]
        %v821 = vld [vmem:[%s216 + $0x80] sm:$0xff]
        %v822 = vld [vmem:[%s216 + $0x88] sm:$0xff]
        %v823 = vld [vmem:[%s216 + $0x90] sm:$0xff]
        %v824 = vld [vmem:[%s216 + $0x98] sm:$0xff]
        %v825 = vld [vmem:[%s216 + $0xa0] sm:$0xff]
        %v826 = vld [vmem:[%s216 + $0xa8] sm:$0xff]
        %v827 = vld [vmem:[%s216 + $0xb0] sm:$0xff]
        %v828 = vld [vmem:[%s216 + $0xb8] sm:$0xff]
        %v829 = vld [vmem:[%s216 + $0xc0] sm:$0xf]
        %v830 = vld [vmem:[%s216 + $0xc8] sm:$0xf]
        %v831 = vld [vmem:[%s216 + $0xd0] sm:$0xff]
        %v832 = vld [vmem:[%s216 + $0xd8] sm:$0xff]
        %v833 = vld [vmem:[%s216 + $0xe0] sm:$0xff]
        %v834 = vld [vmem:[%s216 + $0xe8] sm:$0xff]
        %v835 = vld [vmem:[%s216 + $0xf0] sm:$0xff]
        %v836 = vld [vmem:[%s216 + $0xf8] sm:$0xff]
        %v837 = vld [vmem:[%s216 + $0x100] sm:$0xff]
        %v838 = vld [vmem:[%s216 + $0x108] sm:$0xff]
        %v839 = vld [vmem:[%s216 + $0x110] sm:$0xff]
        %v840 = vld [vmem:[%s216 + $0x118] sm:$0xff]
        %v841 = vld [vmem:[%s216 + $0x120] sm:$0xff]
        %v842 = vld [vmem:[%s216 + $0x128] sm:$0xff]
        %v843 = vld [vmem:[%s216 + $0x130] sm:$0xff]
        %v844 = vld [vmem:[%s216 + $0x138] sm:$0xff]
        %v845 = vld [vmem:[%s216 + $0x140] sm:$0xff]
        %v846 = vld [vmem:[%s216 + $0x148] sm:$0xff]
        %v847 = vld [vmem:[%s216 + $0x150] sm:$0xff]
        %v848 = vld [vmem:[%s216 + $0x158] sm:$0xff]
        %v849 = vld [vmem:[%s216 + $0x160] sm:$0xff]
        %v850 = vld [vmem:[%s216 + $0x168] sm:$0xff]
        %v851 = vld [vmem:[%s216 + $0x170] sm:$0xff]
        %v852 = vld [vmem:[%s216 + $0x178] sm:$0xff]
        %v853 = vld [vmem:[%s216 + $0x180] sm:$0xff]
        %v854 = vld [vmem:[%s216 + $0x188] sm:$0xff]
        %v855 = vld [vmem:[%s216 + $0x190] sm:$0xf]
        %v856 = vld [vmem:[%s216 + $0x198] sm:$0xf]
        %v857 = vld [vmem:[#allocation4] sm:$0xff]
        %v858 = vld [vmem:[#allocation4 + $0x8] sm:$0xff]
        %v859 = vld [vmem:[#allocation4 + $0x10] sm:$0xff]
        %v860 = vld [vmem:[#allocation4 + $0x18] sm:$0xff]
        %v861 = vld [vmem:[#allocation4 + $0x20] sm:$0xff]
        %v862 = vld [vmem:[#allocation4 + $0x28] sm:$0xff]
        %v863 = vld [vmem:[#allocation4 + $0x30] sm:$0xff]
        %v864 = vld [vmem:[#allocation4 + $0x38] sm:$0xff]
        %v865 = vld [vmem:[#allocation4 + $0x40] sm:$0xff]
        %v866 = vld [vmem:[#allocation4 + $0x48] sm:$0xff]
        %v867 = vld [vmem:[#allocation4 + $0x50] sm:$0xff]
        %v868 = vld [vmem:[#allocation4 + $0x58] sm:$0xff]
        %v869 = vld [vmem:[#allocation4 + $0x60] sm:$0xf]
        %871 = vset.pattern.permute.xlu0 0
        %872 = vperm.xlu0 %871, %v857
        %v873 = vpop.permute.xlu0 %872
        %876 = vset.pattern.permute.xlu0 0
        %877 = vperm.xlu0 %876, %v858
        %v878 = vpop.permute.xlu0 %877
        %881 = vset.pattern.permute.xlu0 0
        %882 = vperm.xlu0 %881, %v859
        %v883 = vpop.permute.xlu0 %882
        %886 = vset.pattern.permute.xlu0 0
        %887 = vperm.xlu0 %886, %v860
        %v888 = vpop.permute.xlu0 %887
        %891 = vset.pattern.permute.xlu0 0
        %892 = vperm.xlu0 %891, %v861
        %v893 = vpop.permute.xlu0 %892
        %896 = vset.pattern.permute.xlu0 0
        %897 = vperm.xlu0 %896, %v862
        %v898 = vpop.permute.xlu0 %897
        %901 = vset.pattern.permute.xlu0 0
        %902 = vperm.xlu0 %901, %v863
        %v903 = vpop.permute.xlu0 %902
        %906 = vset.pattern.permute.xlu0 0
        %907 = vperm.xlu0 %906, %v864
        %v908 = vpop.permute.xlu0 %907
        %911 = vset.pattern.permute.xlu0 0
        %912 = vperm.xlu0 %911, %v865
        %v913 = vpop.permute.xlu0 %912
        %916 = vset.pattern.permute.xlu0 0
        %917 = vperm.xlu0 %916, %v866
        %v918 = vpop.permute.xlu0 %917
        %921 = vset.pattern.permute.xlu0 0
        %922 = vperm.xlu0 %921, %v867
        %v923 = vpop.permute.xlu0 %922
        %926 = vset.pattern.permute.xlu0 0
        %927 = vperm.xlu0 %926, %v868
        %v928 = vpop.permute.xlu0 %927
        %931 = vset.pattern.permute.xlu0 0
        %932 = vperm.xlu0 %931, %v869
        %v933 = vpop.permute.xlu0 %932
        %v935 = vmul.f32 %v805, %v873
        %v936 = vmul.f32 %v806, %v873
        %v937 = vmul.f32 %v807, %v878
        %v938 = vmul.f32 %v808, %v878
        %v939 = vmul.f32 %v809, %v883
        %v940 = vmul.f32 %v810, %v883
        %v941 = vmul.f32 %v811, %v888
        %v942 = vmul.f32 %v812, %v888
        %v943 = vmul.f32 %v813, %v893
        %v944 = vmul.f32 %v814, %v893
        %v945 = vmul.f32 %v815, %v898
        %v946 = vmul.f32 %v816, %v898
        %v947 = vmul.f32 %v817, %v903
        %v948 = vmul.f32 %v818, %v903
        %v949 = vmul.f32 %v819, %v908
        %v950 = vmul.f32 %v820, %v908
        %v951 = vmul.f32 %v821, %v913
        %v952 = vmul.f32 %v822, %v913
        %v953 = vmul.f32 %v823, %v918
        %v954 = vmul.f32 %v824, %v918
        %v955 = vmul.f32 %v825, %v923
        %v956 = vmul.f32 %v826, %v923
        %v957 = vmul.f32 %v827, %v928
        %v958 = vmul.f32 %v828, %v928
        %v959 = vmul.f32 %v829, %v933
        %v960 = vmul.f32 %v830, %v933
        %v961 = vmul.f32 %v831, %v873
        %v962 = vmul.f32 %v832, %v873
        %v963 = vmul.f32 %v833, %v878
        %v964 = vmul.f32 %v834, %v878
        %v965 = vmul.f32 %v835, %v883
        %v966 = vmul.f32 %v836, %v883
        %v967 = vmul.f32 %v837, %v888
        %v968 = vmul.f32 %v838, %v888
        %v969 = vmul.f32 %v839, %v893
        %v970 = vmul.f32 %v840, %v893
        %v971 = vmul.f32 %v841, %v898
        %v972 = vmul.f32 %v842, %v898
        %v973 = vmul.f32 %v843, %v903
        %v974 = vmul.f32 %v844, %v903
        %v975 = vmul.f32 %v845, %v908
        %v976 = vmul.f32 %v846, %v908
        %v977 = vmul.f32 %v847, %v913
        %v978 = vmul.f32 %v848, %v913
        %v979 = vmul.f32 %v849, %v918
        %v980 = vmul.f32 %v850, %v918
        %v981 = vmul.f32 %v851, %v923
        %v982 = vmul.f32 %v852, %v923
        %v983 = vmul.f32 %v853, %v928
        %v984 = vmul.f32 %v854, %v928
        %v985 = vmul.f32 %v855, %v933
        %v986 = vmul.f32 %v856, %v933
        %v987 = vld [vmem:[#allocation5] sm:$0xff]
        %v988 = vld [vmem:[#allocation5 + $0x8] sm:$0xff]
        %v989 = vld [vmem:[#allocation5 + $0x10] sm:$0xff]
        %v990 = vld [vmem:[#allocation5 + $0x18] sm:$0xff]
        %v991 = vld [vmem:[#allocation5 + $0x20] sm:$0xff]
        %v992 = vld [vmem:[#allocation5 + $0x28] sm:$0xff]
        %v993 = vld [vmem:[#allocation5 + $0x30] sm:$0xff]
        %v994 = vld [vmem:[#allocation5 + $0x38] sm:$0xff]
        %v995 = vld [vmem:[#allocation5 + $0x40] sm:$0xff]
        %v996 = vld [vmem:[#allocation5 + $0x48] sm:$0xff]
        %v997 = vld [vmem:[#allocation5 + $0x50] sm:$0xff]
        %v998 = vld [vmem:[#allocation5 + $0x58] sm:$0xff]
        %v999 = vld [vmem:[#allocation5 + $0x60] sm:$0xf]
        %1001 = vset.pattern.permute.xlu0 0
        %1002 = vperm.xlu0 %1001, %v987
        %v1003 = vpop.permute.xlu0 %1002
        %1006 = vset.pattern.permute.xlu0 0
        %1007 = vperm.xlu0 %1006, %v988
        %v1008 = vpop.permute.xlu0 %1007
        %1011 = vset.pattern.permute.xlu0 0
        %1012 = vperm.xlu0 %1011, %v989
        %v1013 = vpop.permute.xlu0 %1012
        %1016 = vset.pattern.permute.xlu0 0
        %1017 = vperm.xlu0 %1016, %v990
        %v1018 = vpop.permute.xlu0 %1017
        %1021 = vset.pattern.permute.xlu0 0
        %1022 = vperm.xlu0 %1021, %v991
        %v1023 = vpop.permute.xlu0 %1022
        %1026 = vset.pattern.permute.xlu0 0
        %1027 = vperm.xlu0 %1026, %v992
        %v1028 = vpop.permute.xlu0 %1027
        %1031 = vset.pattern.permute.xlu0 0
        %1032 = vperm.xlu0 %1031, %v993
        %v1033 = vpop.permute.xlu0 %1032
        %1036 = vset.pattern.permute.xlu0 0
        %1037 = vperm.xlu0 %1036, %v994
        %v1038 = vpop.permute.xlu0 %1037
        %1041 = vset.pattern.permute.xlu0 0
        %1042 = vperm.xlu0 %1041, %v995
        %v1043 = vpop.permute.xlu0 %1042
        %1046 = vset.pattern.permute.xlu0 0
        %1047 = vperm.xlu0 %1046, %v996
        %v1048 = vpop.permute.xlu0 %1047
        %1051 = vset.pattern.permute.xlu0 0
        %1052 = vperm.xlu0 %1051, %v997
        %v1053 = vpop.permute.xlu0 %1052
        %1056 = vset.pattern.permute.xlu0 0
        %1057 = vperm.xlu0 %1056, %v998
        %v1058 = vpop.permute.xlu0 %1057
        %1061 = vset.pattern.permute.xlu0 0
        %1062 = vperm.xlu0 %1061, %v999
        %v1063 = vpop.permute.xlu0 %1062
        %v1065 = vadd.f32 %v935, %v1003
        %v1066 = vadd.f32 %v936, %v1003
        %v1067 = vadd.f32 %v937, %v1008
        %v1068 = vadd.f32 %v938, %v1008
        %v1069 = vadd.f32 %v939, %v1013
        %v1070 = vadd.f32 %v940, %v1013
        %v1071 = vadd.f32 %v941, %v1018
        %v1072 = vadd.f32 %v942, %v1018
        %v1073 = vadd.f32 %v943, %v1023
        %v1074 = vadd.f32 %v944, %v1023
        %v1075 = vadd.f32 %v945, %v1028
        %v1076 = vadd.f32 %v946, %v1028
        %v1077 = vadd.f32 %v947, %v1033
        %v1078 = vadd.f32 %v948, %v1033
        %v1079 = vadd.f32 %v949, %v1038
        %v1080 = vadd.f32 %v950, %v1038
        %v1081 = vadd.f32 %v951, %v1043
        %v1082 = vadd.f32 %v952, %v1043
        %v1083 = vadd.f32 %v953, %v1048
        %v1084 = vadd.f32 %v954, %v1048
        %v1085 = vadd.f32 %v955, %v1053
        %v1086 = vadd.f32 %v956, %v1053
        %v1087 = vadd.f32 %v957, %v1058
        %v1088 = vadd.f32 %v958, %v1058
        %v1089 = vadd.f32 %v959, %v1063
        %v1090 = vadd.f32 %v960, %v1063
        %v1091 = vadd.f32 %v961, %v1003
        %v1092 = vadd.f32 %v962, %v1003
        %v1093 = vadd.f32 %v963, %v1008
        %v1094 = vadd.f32 %v964, %v1008
        %v1095 = vadd.f32 %v965, %v1013
        %v1096 = vadd.f32 %v966, %v1013
        %v1097 = vadd.f32 %v967, %v1018
        %v1098 = vadd.f32 %v968, %v1018
        %v1099 = vadd.f32 %v969, %v1023
        %v1100 = vadd.f32 %v970, %v1023
        %v1101 = vadd.f32 %v971, %v1028
        %v1102 = vadd.f32 %v972, %v1028
        %v1103 = vadd.f32 %v973, %v1033
        %v1104 = vadd.f32 %v974, %v1033
        %v1105 = vadd.f32 %v975, %v1038
        %v1106 = vadd.f32 %v976, %v1038
        %v1107 = vadd.f32 %v977, %v1043
        %v1108 = vadd.f32 %v978, %v1043
        %v1109 = vadd.f32 %v979, %v1048
        %v1110 = vadd.f32 %v980, %v1048
        %v1111 = vadd.f32 %v981, %v1053
        %v1112 = vadd.f32 %v982, %v1053
        %v1113 = vadd.f32 %v983, %v1058
        %v1114 = vadd.f32 %v984, %v1058
        %v1115 = vadd.f32 %v985, %v1063
        %v1116 = vadd.f32 %v986, %v1063
        %1117 = vst [vmem:[%s230] sm:$0xff] %v1065
        %1118 = vst [vmem:[%s230 + $0x8] sm:$0xff] %v1066
        %1119 = vst [vmem:[%s230 + $0x10] sm:$0xff] %v1067
        %1120 = vst [vmem:[%s230 + $0x18] sm:$0xff] %v1068
        %1121 = vst [vmem:[%s230 + $0x20] sm:$0xff] %v1069
        %1122 = vst [vmem:[%s230 + $0x28] sm:$0xff] %v1070
        %1123 = vst [vmem:[%s230 + $0x30] sm:$0xff] %v1071
        %1124 = vst [vmem:[%s230 + $0x38] sm:$0xff] %v1072
        %1125 = vst [vmem:[%s230 + $0x40] sm:$0xff] %v1073
        %1126 = vst [vmem:[%s230 + $0x48] sm:$0xff] %v1074
        %1127 = vst [vmem:[%s230 + $0x50] sm:$0xff] %v1075
        %1128 = vst [vmem:[%s230 + $0x58] sm:$0xff] %v1076
        %1129 = vst [vmem:[%s230 + $0x60] sm:$0xff] %v1077
        %1130 = vst [vmem:[%s230 + $0x68] sm:$0xff] %v1078
        %1131 = vst [vmem:[%s230 + $0x70] sm:$0xff] %v1079
        %1132 = vst [vmem:[%s230 + $0x78] sm:$0xff] %v1080
        %1133 = vst [vmem:[%s230 + $0x80] sm:$0xff] %v1081
        %1134 = vst [vmem:[%s230 + $0x88] sm:$0xff] %v1082
        %1135 = vst [vmem:[%s230 + $0x90] sm:$0xff] %v1083
        %1136 = vst [vmem:[%s230 + $0x98] sm:$0xff] %v1084
        %1137 = vst [vmem:[%s230 + $0xa0] sm:$0xff] %v1085
        %1138 = vst [vmem:[%s230 + $0xa8] sm:$0xff] %v1086
        %1139 = vst [vmem:[%s230 + $0xb0] sm:$0xff] %v1087
        %1140 = vst [vmem:[%s230 + $0xb8] sm:$0xff] %v1088
        %1141 = vst [vmem:[%s230 + $0xc0] sm:$0xf] %v1089
        %1142 = vst [vmem:[%s230 + $0xc8] sm:$0xf] %v1090
        %1143 = vst [vmem:[%s230 + $0xd0] sm:$0xff] %v1091
        %1144 = vst [vmem:[%s230 + $0xd8] sm:$0xff] %v1092
        %1145 = vst [vmem:[%s230 + $0xe0] sm:$0xff] %v1093
        %1146 = vst [vmem:[%s230 + $0xe8] sm:$0xff] %v1094
        %1147 = vst [vmem:[%s230 + $0xf0] sm:$0xff] %v1095
        %1148 = vst [vmem:[%s230 + $0xf8] sm:$0xff] %v1096
        %1149 = vst [vmem:[%s230 + $0x100] sm:$0xff] %v1097
        %1150 = vst [vmem:[%s230 + $0x108] sm:$0xff] %v1098
        %1151 = vst [vmem:[%s230 + $0x110] sm:$0xff] %v1099
        %1152 = vst [vmem:[%s230 + $0x118] sm:$0xff] %v1100
        %1153 = vst [vmem:[%s230 + $0x120] sm:$0xff] %v1101
        %1154 = vst [vmem:[%s230 + $0x128] sm:$0xff] %v1102
        %1155 = vst [vmem:[%s230 + $0x130] sm:$0xff] %v1103
        %1156 = vst [vmem:[%s230 + $0x138] sm:$0xff] %v1104
        %1157 = vst [vmem:[%s230 + $0x140] sm:$0xff] %v1105
        %1158 = vst [vmem:[%s230 + $0x148] sm:$0xff] %v1106
        %1159 = vst [vmem:[%s230 + $0x150] sm:$0xff] %v1107
        %1160 = vst [vmem:[%s230 + $0x158] sm:$0xff] %v1108
        %1161 = vst [vmem:[%s230 + $0x160] sm:$0xff] %v1109
        %1162 = vst [vmem:[%s230 + $0x168] sm:$0xff] %v1110
        %1163 = vst [vmem:[%s230 + $0x170] sm:$0xff] %v1111
        %1164 = vst [vmem:[%s230 + $0x178] sm:$0xff] %v1112
        %1165 = vst [vmem:[%s230 + $0x180] sm:$0xff] %v1113
        %1166 = vst [vmem:[%s230 + $0x188] sm:$0xff] %v1114
        %1167 = vst [vmem:[%s230 + $0x190] sm:$0xf] %v1115
        %1168 = vst [vmem:[%s230 + $0x198] sm:$0xf] %v1116
      $region48: #{tpu_custom_call.1} parent=31 // pred_fallthru
        _
      %s1169 = smul.u32 %s20, %s19
      %s1170 = smul.u32 %s21, %s19
      %s1171 = smul.u32 2, %s1169
      %s1172 = smul.u32 2, %s1170
      %p1173 = scmp.lt.s32.totalorder %s1171, 1
      %s1174 = scalar_select %p1173, %s1171, 1
      %p1175 = scmp.lt.s32.totalorder %s1172, 1
      %s1176 = scalar_select %p1175, %s1172, 1
      %s1177 = smul.addr %s1174, 26
      %s1178 = sadd.s32 %s1176, %s1177
      %s1179 = smul.addr %s1178, 8
      %s1180 = scalar_lea.vmem %s3, %s1179
      // Predicated region
      $region49: #{tpu_custom_call.1} parent=31 // pred_check
        %p1181 = pneg %p127
      $region50: #{tpu_custom_call.1} parent=31 // pred_check_branch
        %1183 = sbr.rel (%p1181) target = $region52
      $region51: #{tpu_custom_call.1} parent=31 // pred_region
        %s1184 = smul.u32 %s20, %s19
        %s1185 = smul.u32 %s21, %s19
        %s1186 = smul.u32 2, %s1184
        %s1187 = smul.u32 2, %s1185
      $region52: #{tpu_custom_call.1} parent=31 // pred_fallthru
        _
    $region32: #{tpu_custom_call.1} parent=5 // pred_fallthru
      _
    %p1188 = scmp.le.s32.totalorder 2, %s9
    // Predicated region
    $region53: #{tpu_custom_call.1} parent=5 // pred_check
      %p1189 = pneg %p1188
    $region54: #{tpu_custom_call.1} parent=5 // pred_check_branch
      %1191 = sbr.rel (%p1189) target = $region56
    $region55: #{tpu_custom_call.1} parent=5 // pred_region
      %s1192 = ssub.s32 %s9, 2
      // Predicated region
      $region57: #{tpu_custom_call.1} parent=55 // pred_check
        %p1193 = pneg %p133
      $region58: #{tpu_custom_call.1} parent=55 // pred_check_branch
        %1195 = sbr.rel (%p1193) target = $region60
      $region59: #{tpu_custom_call.1} parent=55 // pred_region
        %s1196 = smul.u32 %s23, %s22
        %s1197 = smul.u32 %s24, %s22
        %s1198 = smul.u32 2, %s1196
        %s1199 = smul.u32 2, %s1197
        %p1200 = scmp.lt.s32.totalorder %s1198, 1
        %s1201 = scalar_select %p1200, %s1198, 1
        %p1202 = scmp.lt.s32.totalorder %s1199, 1
        %s1203 = scalar_select %p1202, %s1199, 1
        %s1204 = smul.addr %s1201, 26
        %s1205 = sadd.s32 %s1203, %s1204
        %s1206 = smul.addr %s1205, 8
        %s1207 = scalar_lea.vmem %s3, %s1206
      $region60: #{tpu_custom_call.1} parent=55 // pred_fallthru
        _
    $region56: #{tpu_custom_call.1} parent=5 // pred_fallthru
      _
  $region6: #{tpu_custom_call.1} parent=0 // loop_footer
    %s13 = sadd.s32 1, %s9
  $region7: #{tpu_custom_call.1} parent=0 // loop_footer_branch
    %8 = sbr.rel target = $region3
  $region8: #{tpu_custom_call.1} parent=0 // loop_exit
    _

</llo_original>
